<compile_context>
chip_gen: v5e
topology: v5e:2x2
jax: 0.10.0
libtpu: 0.0.40
codegen_flags: <defaults>
</compile_context>

<pallas_src>
import jax
import jax.numpy as jnp
from jax.experimental import pallas as pl
from jax.experimental.pallas import tpu as pltpu


# Keep one block <= ~2 MiB so (x + out + w) x 2 double-buffers stays within
# the default scoped-VMEM limit on every chip generation.
_BLOCK_BYTES_TARGET = 2 * 1024 * 1024


def _add_kernel(x_ref, w_ref, o_ref):
    # x_ref / o_ref: (TS, D) or (TB, TF); w_ref: (TS, D) or (1, TF).
    # Plain full-vreg VPU add; cast handles mixed x / W_pos dtypes.
    o_ref[...] = (x_ref[...] + w_ref[...]).astype(o_ref.dtype)


def _pick_tile(extent, row_bytes):
    """Largest power-of-two row tile (>=32) dividing `extent` that keeps one
    block under the byte target; falls back to the full extent."""
    for ts in (4096, 2048, 1024, 512, 256, 128, 64, 32):
        if extent % ts == 0 and ts * row_bytes <= _BLOCK_BYTES_TARGET:
            return ts
    return extent


def _pos_embed_tiled(x, w_pos, out_dtype):
    """d_model is lane-aligned: tile over the sequence axis, keep W resident."""
    B, S, D = x.shape
    itemsize = jnp.dtype(x.dtype).itemsize
    ts = _pick_tile(S, D * itemsize)
    if ts % 8 != 0:
        # Degenerate tiny/ragged-seq fallback: slice so the W block equals the
        # full (sliced) array extent and satisfies the (8, 128) block rule.
        w_pos = w_pos[:S]
    n_s = S // ts

    return pl.pallas_call(
        _add_kernel,
        out_shape=jax.ShapeDtypeStruct((B, S, D), out_dtype),
        grid_spec=pl.GridSpec(
            # Batch is the innermost grid axis: the W block index (s, 0) is
            # constant along it, so the W tile stays VMEM-resident across all
            # B steps instead of being re-fetched from HBM.
            grid=(n_s, B),
            in_specs=[
                pl.BlockSpec((None, ts, D), lambda s, b: (b, s, 0)),
                # Full W_pos is passed in; the [:S] slice lives in this map.
                pl.BlockSpec((ts, D), lambda s, b: (s, 0)),
            ],
            out_specs=pl.BlockSpec((None, ts, D), lambda s, b: (b, s, 0)),
        ),
        compiler_params=pltpu.CompilerParams(
            dimension_semantics=("parallel", "parallel"),
        ),
    )(x, w_pos)


def _pos_embed_flat(x, w_pos, out_dtype):
    """d_model not a multiple of 128: present a lane-dense (., S*D) layout so
    stores are unmasked full-width vst."""
    B, S, D = x.shape
    F = S * D
    itemsize = jnp.dtype(x.dtype).itemsize

    x2 = x.reshape(B, F)
    # TODO(synk): this path materializes the (tiny) w_pos[:S] slice in the
    # wrapper; it is only taken for small / unaligned d_model.
    w2 = w_pos[:S].reshape(1, F)

    # Lane-axis tile: as large as possible, multiple of 128, dividing F.
    tf = F
    for cand in (262144, 131072, 65536, 32768, 16384, 8192,
                 4096, 2048, 1024, 512, 256, 128):
        if F % cand == 0 and 8 * cand * itemsize <= _BLOCK_BYTES_TARGET:
            tf = cand
            break
    # Sublane-axis tile over batch.
    tb = B
    for cand in (512, 256, 128, 64, 32, 16, 8):
        if B % cand == 0 and cand * tf * itemsize <= _BLOCK_BYTES_TARGET:
            tb = cand
            break

    n_f, n_b = F // tf, B // tb

    out2 = pl.pallas_call(
        _add_kernel,
        out_shape=jax.ShapeDtypeStruct((B, F), out_dtype),
        grid_spec=pl.GridSpec(
            # Batch innermost: W block index (0, f) is constant along it, so
            # the W tile stays resident in VMEM across the inner axis.
            grid=(n_f, n_b),
            in_specs=[
                pl.BlockSpec((tb, tf), lambda f, b: (b, f)),
                pl.BlockSpec((1, tf), lambda f, b: (0, f)),
            ],
            out_specs=pl.BlockSpec((tb, tf), lambda f, b: (b, f)),
        ),
        compiler_params=pltpu.CompilerParams(
            dimension_semantics=("parallel", "parallel"),
        ),
    )(x2, w2)
    return out2.reshape(B, S, D)


def pos_embed(x, w_pos):
    """x: (B, S, D); w_pos: (max_ctx, D). Returns x + w_pos[:S]
    (the PyTorch PosEmbed.forward)."""
    B, S, D = x.shape
    out_dtype = jnp.result_type(x.dtype, w_pos.dtype)
    if D % 128 == 0:
        return _pos_embed_tiled(x, w_pos, out_dtype)
    return _pos_embed_flat(x, w_pos, out_dtype)


if __name__ == "__main__":
    key = jax.random.PRNGKey(0)
    kx, kw = jax.random.split(key)

    # Small shapes consistent with the module: batch=2, seq=8, d_model=32,
    # max_ctx=16.
    batch, seq, d_model, max_ctx = 2, 8, 32, 16

    x = jax.random.normal(kx, (batch, seq, d_model), dtype=jnp.float32)
    # W_pos ~ randn(max_ctx, d_model) / sqrt(d_model), deterministic init.
    w_pos = jax.random.normal(kw, (max_ctx, d_model), dtype=jnp.float32) / jnp.sqrt(
        jnp.float32(d_model)
    )

    out = pos_embed(x, w_pos)
    jax.block_until_ready(out)

    ref = x + w_pos[:seq]
    assert out.shape == x.shape and out.dtype == x.dtype
    assert jnp.allclose(out, ref, atol=1e-6, rtol=1e-6)

    # Also exercise the lane-aligned (d_model % 128 == 0) seq-tiled path.
    seq2, d2, max_ctx2 = 64, 128, 128
    x2 = jax.random.normal(kx, (batch, seq2, d2), dtype=jnp.float32)
    w2 = jax.random.normal(kw, (max_ctx2, d2), dtype=jnp.float32) / jnp.sqrt(
        jnp.float32(d2)
    )
    out2 = pos_embed(x2, w2)
    jax.block_until_ready(out2)
    assert jnp.allclose(out2, x2 + w2[:seq2], atol=1e-6, rtol=1e-6)

    print("KERNEL_OK")
</pallas_src>

<mosaic_0001>
module attributes {stable_mosaic.version = 11 : i64} {
  func.func @_add_kernel(%arg0: i32, %arg1: i32, %arg2: memref<2x256xf32, #tpu.memory_space<vmem>>, %arg3: memref<1x256xf32, #tpu.memory_space<vmem>>, %arg4: memref<2x256xf32, #tpu.memory_space<vmem>>) attributes {dimension_semantics = [#tpu.dimension_semantics<parallel>, #tpu.dimension_semantics<parallel>], iteration_bounds = array<i64: 1, 1>, scalar_prefetch = 0 : i64, scratch_operands = 0 : i64, tpu.core_type = #tpu.core_type<tc>, window_params = [{transform_indices = @transform_0, window_bounds = array<i64: 2, 256>}, {transform_indices = @transform_1, window_bounds = array<i64: 1, 256>}, {transform_indices = @transform_2, window_bounds = array<i64: 2, 256>}]} {
    %c0 = arith.constant 0 : index
    %c0_0 = arith.constant 0 : index
    %0 = vector.load %arg2[%c0, %c0_0] : memref<2x256xf32, #tpu.memory_space<vmem>>, vector<2x256xf32>
    %c0_1 = arith.constant 0 : index
    %c0_2 = arith.constant 0 : index
    %1 = vector.load %arg3[%c0_1, %c0_2] : memref<1x256xf32, #tpu.memory_space<vmem>>, vector<1x256xf32>
    %2 = vector.broadcast %1 : vector<1x256xf32> to vector<2x256xf32>
    %3 = arith.addf %0, %2 : vector<2x256xf32>
    %c0_3 = arith.constant 0 : index
    %c0_4 = arith.constant 0 : index
    %4 = vector.load %arg4[%c0_3, %c0_4] : memref<2x256xf32, #tpu.memory_space<vmem>>, vector<2x256xf32>
    tpu.vector_store %arg4[%c0_3, %c0_4], %3 {strides = array<i32>} : memref<2x256xf32, #tpu.memory_space<vmem>>, vector<2x256xf32>,
    return
  }
  func.func @transform_0(%arg0: i32, %arg1: i32) -> (i32, i32) {
    %c0_i32 = arith.constant 0 : i32
    return %arg1, %arg0 : i32, i32
  }
  func.func @transform_1(%arg0: i32, %arg1: i32) -> (i32, i32) {
    %c0_i32 = arith.constant 0 : i32
    %c0_i32_0 = arith.constant 0 : i32
    return %c0_i32, %arg0 : i32, i32
  }
  func.func @transform_2(%arg0: i32, %arg1: i32) -> (i32, i32) {
    %c0_i32 = arith.constant 0 : i32
    return %arg1, %arg0 : i32, i32
  }
}

</mosaic_0001>

<llo_original>
// kernel: tpu_custom_call.1
$region0: #{tpu_custom_call.1}
  #allocation0 [shape = 'u32[]', space=smem, size = 0x4, offset = 0x4, fixed_abs, tag = 'smem constant byte address 0x4 - core index']
  #allocation1 [shape = 'u32[72,128]{1,0:T(1,128)}', space=vmem, size = 0x9000, scoped, tag = 'internal scratch']
  %s0 = inlined_call_operand.hbm [shape: f32[2,256], index: 0, kind: input, shape index: {}]
  %s1 = inlined_call_operand.hbm [shape: f32[1,256], index: 1, kind: input, shape index: {}]
  %s2 = inlined_call_operand.hbm [shape: f32[2,256], index: 2, kind: output, shape index: {}]
  %s3 = sld [smem:[#allocation0]]
  $region26: #{tpu_custom_call.1} parent=0
    _
  %s5 = ssub.s32 1, %s3
  %s6 = scalar_select 0, %s5, %s3
  $region1: #{tpu_custom_call.1} parent=0
    #allocation2 [shape = 'u8[2048]{0}', space=vmem, size = 0x800, scoped, tag = 'input window, operand 0, single buffered']
    #allocation3 [shape = 's32[1]{0}', space=sflag, size = 0x4, scoped, tag = 'scoped memory for tpu_custom_call.1']
    #allocation4 [shape = 's32[1]{0}', space=sflag, size = 0x4, scoped, tag = 'scoped memory for tpu_custom_call.1']
    #allocation5 [shape = 'u8[1024]{0}', space=vmem, size = 0x400, scoped, tag = 'input window, operand 1, single buffered']
    #allocation6 [shape = 's32[1]{0}', space=sflag, size = 0x4, scoped, tag = 'scoped memory for tpu_custom_call.1']
    #allocation7 [shape = 'u8[2048]{0}', space=vmem, size = 0x800, scoped, tag = 'output window, operand 0, single buffered']
    %7 = vsyncpa [#allocation3], 0
    %8 = vsyncpa [#allocation6], 0
    %9 = vsyncpa [#allocation4], 0
    // Predicated region
    $region2: #{tpu_custom_call.1} parent=1 // pred_check
      _
    $region3: #{tpu_custom_call.1} parent=1 // pred_check_branch
      %11 = sbr.rel (0) target = $region5
    $region4: #{tpu_custom_call.1} parent=1 // pred_region
      %13 = vsyncadd [#allocation3], 0
      %s15 = sshll.u32 %s0, 4
      %s16 = int_to_ptr.hbm [resolvable:$true] %s15
      %s17 = sshll.u32 [#allocation2], 4
      %s18 = int_to_ptr.vmem [resolvable:$true] %s17
      %20 = dma.hbm_to_vmem [thread:$0]  %s16, 64, %s18, [#allocation3]
    $region5: #{tpu_custom_call.1} parent=1 // pred_fallthru
      _
    // Predicated region
    $region6: #{tpu_custom_call.1} parent=1 // pred_check
      _
    $region7: #{tpu_custom_call.1} parent=1 // pred_check_branch
      %22 = sbr.rel (0) target = $region9
    $region8: #{tpu_custom_call.1} parent=1 // pred_region
      %24 = vsyncadd [#allocation6], 0
      %s26 = sshll.u32 %s1, 4
      %s27 = int_to_ptr.hbm [resolvable:$true] %s26
      %s28 = sshll.u32 [#allocation5], 4
      %s29 = int_to_ptr.vmem [resolvable:$true] %s28
      %31 = dma.hbm_to_vmem [thread:$0]  %s27, 32, %s29, [#allocation6]
    $region9: #{tpu_custom_call.1} parent=1 // pred_fallthru
      _
    // Predicated region
    $region10: #{tpu_custom_call.1} parent=1 // pred_check
      _
    $region11: #{tpu_custom_call.1} parent=1 // pred_check_branch
      %33 = sbr.rel (0) target = $region13
    $region12: #{tpu_custom_call.1} parent=1 // pred_region
      %35 = dma.done [#allocation3], 64
    $region13: #{tpu_custom_call.1} parent=1 // pred_fallthru
      _
    // Predicated region
    $region14: #{tpu_custom_call.1} parent=1 // pred_check
      _
    $region15: #{tpu_custom_call.1} parent=1 // pred_check_branch
      %37 = sbr.rel (0) target = $region17
    $region16: #{tpu_custom_call.1} parent=1 // pred_region
      %39 = dma.done [#allocation6], 32
    $region17: #{tpu_custom_call.1} parent=1 // pred_fallthru
      _
    %v40 = vld [vmem:[#allocation2] sm:$0xf]
    %v41 = vld [vmem:[#allocation5] sm:$0x3]
    %v43 = vperm.slane %v41, 0
    %v44 = vperm.slane %v41, 1
    %v45 = vrot.slane %v44, 6
    %vm46 = vcmask 1041408
    %v47 = vsel %vm46, %v43, %v45
    %v49 = vadd.f32 %v40, %v47
    %50 = vst [vmem:[#allocation7] sm:$0xf] %v49
    // Predicated region
    $region18: #{tpu_custom_call.1} parent=1 // pred_check
      _
    $region19: #{tpu_custom_call.1} parent=1 // pred_check_branch
      %52 = sbr.rel (0) target = $region21
    $region20: #{tpu_custom_call.1} parent=1 // pred_region
      %54 = vsyncadd [#allocation4], 0
      %s56 = sshll.u32 [#allocation7], 4
      %s57 = int_to_ptr.vmem [resolvable:$true] %s56
      %s58 = sshll.u32 %s2, 4
      %s59 = int_to_ptr.hbm [resolvable:$true] %s58
      %61 = dma.vmem_to_hbm [thread:$0]  %s57, 64, %s59, [#allocation4]
    $region21: #{tpu_custom_call.1} parent=1 // pred_fallthru
      _
    // Predicated region
    $region22: #{tpu_custom_call.1} parent=1 // pred_check
      _
    $region23: #{tpu_custom_call.1} parent=1 // pred_check_branch
      %63 = sbr.rel (0) target = $region25
    $region24: #{tpu_custom_call.1} parent=1 // pred_region
      %65 = dma.done [#allocation4], 64
    $region25: #{tpu_custom_call.1} parent=1 // pred_fallthru
      _
    %66 = vsyncpa [#allocation3], 1
    %67 = vsyncpa [#allocation6], 1
    %68 = vsyncpa [#allocation4], 1

</llo_original>
